<compile_context>
chip_gen: v7x
topology: tpu7x:2x2x1
jax: 0.10.0
libtpu: 0.0.40
codegen_flags: <defaults>
</compile_context>

<pallas_src>
import functools

import jax
import jax.numpy as jnp
import numpy as np
from jax.experimental import pallas as pl
from jax.experimental.pallas import tpu as pltpu


# --------------------------------------------------------------------------
# Small helpers
# --------------------------------------------------------------------------
def _round_up(x, m):
    return ((x + m - 1) // m) * m


def _pick_tm(n_tokens, target):
    """Row tile: `target` for large N, else all rows rounded to a 16-multiple
    (16 keeps bf16 sublane packing happy; 8 would suffice for f32)."""
    if n_tokens >= target:
        return target
    return max(16, _round_up(n_tokens, 16))


def _divisors_desc(n):
    return [d for d in range(n, 0, -1) if n % d == 0]


def _largest_ff_tile(ff_pad, fits):
    """Largest 128-multiple divisor of ff_pad that fits; prefer 256-multiples
    (clean 256x256 MXU passes on v6e/v7x)."""
    divs = [t for t in range(ff_pad, 0, -128) if ff_pad % t == 0]
    for t in divs:
        if t % 256 == 0 and fits(t):
            return t
    for t in divs:
        if fits(t):
            return t
    return divs[-1]


@functools.lru_cache(maxsize=1)
def _vmem_budget_bytes():
    """Generation-aware usable-VMEM budget (~80% of physical capacity)."""
    cap = 0
    try:  # one-time capability query; attribute names may differ on old jax
        cap = int(pltpu.get_tpu_info().vmem_capacity_bytes)
    except Exception:
        cap = 0
    if not cap:
        try:
            kind = jax.devices()[0].device_kind.lower()
        except Exception:
            kind = ""
        cap = (64 << 20) if ("v7" in kind or "7x" in kind) else (128 << 20)
    return int(cap * 0.8)


@functools.lru_cache(maxsize=1)
def _is_multi_core_chip():
    """v7x-style chips have 2 TensorCores -> shard the row axis across them."""
    try:
        kind = jax.devices()[0].device_kind.lower()
    except Exception:
        return False
    return ("v7" in kind) or ("7x" in kind)


def _dim_semantics(row_core_parallel, second):
    """second in {"parallel", "arbitrary"}; row axis may be CORE_PARALLEL."""
    if row_core_parallel:
        cp = getattr(pltpu, "CORE_PARALLEL", None)
        sec = getattr(pltpu, second.upper(), None)
        if cp is not None and sec is not None:
            return (cp, sec)
    return ("parallel", second)


# --------------------------------------------------------------------------
# Kernel builders (lru-cached per static configuration)
# --------------------------------------------------------------------------
@functools.lru_cache(maxsize=None)
def _build_grouped_call(n_pad, d_model, ffg, dg, m, n_chunks, tm,
                        cdt_name, out_dtype_name, vmem_limit, row_core_parallel):
    """Shared-RHS grouped path (FF/G and D/G are 128-multiples).

    grid = (row tiles, group chunks); each chunk covers `m` groups and writes
    its own lane-dense slice of the output columns -> no reduction axis, no
    accumulator, ideal MAC count (W2 is the single shared (FFg, Dg) block).
    `cdt_name` only participates in the cache key (weights carry their dtype).
    """
    del cdt_name
    out_dtype = np.dtype(out_dtype_name)

    def kernel(x_ref, w1_ref, b1_ref, w2_ref, b2_ref, o_ref):
        # x_ref:  (tm, D)       activation dtype as stored in HBM (cast here)
        # w1_ref: (D, m*FFg)    compute dtype, pre-transposed W1 chunk
        # b1_ref: (1, m*FFg)    f32
        # w2_ref: (FFg, Dg)     compute dtype, shared across all groups
        # b2_ref: (1, m*Dg)     f32
        # o_ref:  (tm, m*Dg)
        xt = x_ref[...].astype(w1_ref.dtype)
        h = jnp.dot(xt, w1_ref[...], preferred_element_type=jnp.float32)
        h = jnp.maximum(h + b1_ref[...], 0.0)
        # TODO(synk): dropout is identity here (eval mode); training would draw
        # a mask with pltpu.prng_seed / pltpu.stateful_bernoulli.
        b2v = b2_ref[...]
        for g in range(m):  # short static loop over the groups in this chunk
            hg = h[:, g * ffg:(g + 1) * ffg].astype(w2_ref.dtype)
            yg = jnp.dot(hg, w2_ref[...], preferred_element_type=jnp.float32)
            o_ref[:, g * dg:(g + 1) * dg] = (
                yg + b2v[:, g * dg:(g + 1) * dg]).astype(o_ref.dtype)

    grid = (n_pad // tm, n_chunks)
    call = pl.pallas_call(
        kernel,
        out_shape=jax.ShapeDtypeStruct((n_pad, dg * m * n_chunks), out_dtype),
        grid_spec=pltpu.PrefetchScalarGridSpec(
            num_scalar_prefetch=0,
            grid=grid,
            in_specs=[
                pl.BlockSpec((tm, d_model), lambda i, k: (i, 0)),       # x
                pl.BlockSpec((d_model, ffg * m), lambda i, k: (0, k)),  # W1^T chunk
                pl.BlockSpec((1, ffg * m), lambda i, k: (0, k)),        # b1 chunk
                pl.BlockSpec((ffg, dg), lambda i, k: (0, 0)),           # shared W2^T
                pl.BlockSpec((1, dg * m), lambda i, k: (0, k)),         # b2 chunk
            ],
            out_specs=pl.BlockSpec((tm, dg * m), lambda i, k: (i, k)),
        ),
        compiler_params=pltpu.CompilerParams(
            dimension_semantics=_dim_semantics(row_core_parallel, "parallel"),
            vmem_limit_bytes=int(vmem_limit),
        ),
    )
    return jax.jit(call)


@functools.lru_cache(maxsize=None)
def _build_blockdiag_call(n_pad, d_model, ff_pad, d_pad, tff, tm,
                          cdt_name, out_dtype_name, vmem_limit, row_core_parallel):
    """Block-diagonal-W2 path for configs whose group shapes are not
    128-aligned (weights were zero-padded to lane-dense shapes at prep time)."""
    del cdt_name
    out_dtype = np.dtype(out_dtype_name)
    n_ff = ff_pad // tff

    if n_ff == 1:
        # Whole-FF resident: no accumulator, one lane-dense full-width store.
        def kernel(x_ref, w1_ref, b1_ref, w2_ref, b2_ref, o_ref):
            xt = x_ref[...].astype(w1_ref.dtype)
            h = jnp.dot(xt, w1_ref[...], preferred_element_type=jnp.float32)
            h = jnp.maximum(h + b1_ref[...], 0.0)
            y = jnp.dot(h.astype(w2_ref.dtype), w2_ref[...],
                        preferred_element_type=jnp.float32)
            o_ref[...] = (y + b2_ref[...]).astype(o_ref.dtype)

        scratch = []
        second_sem = "parallel"
    else:
        # FF tiled (weight streaming): f32 accumulator across the k axis.
        def kernel(x_ref, w1_ref, b1_ref, w2_ref, b2_ref, o_ref, acc_ref):
            k = pl.program_id(1)

            @pl.when(k == 0)
            def _init():
                acc_ref[...] = jnp.zeros_like(acc_ref)

            xt = x_ref[...].astype(w1_ref.dtype)
            h = jnp.dot(xt, w1_ref[...], preferred_element_type=jnp.float32)
            h = jnp.maximum(h + b1_ref[...], 0.0)
            acc_ref[...] += jnp.dot(h.astype(w2_ref.dtype), w2_ref[...],
                                    preferred_element_type=jnp.float32)

            @pl.when(k == pl.num_programs(1) - 1)
            def _finalize():
                o_ref[...] = (acc_ref[...] + b2_ref[...]).astype(o_ref.dtype)

        scratch = [pltpu.VMEM((tm, d_pad), jnp.float32)]
        second_sem = "arbitrary"

    grid = (n_pad // tm, n_ff)
    call = pl.pallas_call(
        kernel,
        out_shape=jax.ShapeDtypeStruct((n_pad, d_pad), out_dtype),
        grid_spec=pltpu.PrefetchScalarGridSpec(
            num_scalar_prefetch=0,
            grid=grid,
            in_specs=[
                pl.BlockSpec((tm, d_model), lambda i, k: (i, 0)),   # x
                pl.BlockSpec((d_model, tff), lambda i, k: (0, k)),  # W1^T chunk
                pl.BlockSpec((1, tff), lambda i, k: (0, k)),        # b1 chunk
                pl.BlockSpec((tff, d_pad), lambda i, k: (k, 0)),    # block-diag W2 chunk
                pl.BlockSpec((1, d_pad), lambda i, k: (0, 0)),      # b2
            ],
            out_specs=pl.BlockSpec((tm, d_pad), lambda i, k: (i, 0)),
            scratch_shapes=scratch,
        ),
        compiler_params=pltpu.CompilerParams(
            dimension_semantics=_dim_semantics(row_core_parallel, second_sem),
            vmem_limit_bytes=int(vmem_limit),
        ),
    )
    return jax.jit(call)


# --------------------------------------------------------------------------
# Parameter preparation (one-time, hoisted out of the per-call path)
# --------------------------------------------------------------------------
def prepare_gffn_params(w1, b1, w2, b2, groups, compute_dtype=jnp.float32):
    """One-time parameter prep.

    w1: (FF, D), b1: (FF,)            -- nn.Linear(D, FF) layout
    w2: (D//G, FF//G), b2: (D//G,)    -- nn.Linear(FF//G, D//G), shared by groups

    If FF/G and D/G are 128-multiples the shared-RHS grouped path is used
    (W2 kept as a single (FF/G, D/G) block).  Otherwise W2 is expanded to a
    block-diagonal (FF_pad, D_pad) matrix, zero-padded to lane-dense shapes.
    """
    w1 = jnp.asarray(w1)
    w2 = jnp.asarray(w2)
    FF, D = w1.shape
    Dg, FFg = w2.shape
    assert FF % groups == 0 and D % groups == 0
    assert FFg == FF // groups and Dg == D // groups

    cdt = np.dtype(compute_dtype)
    grouped = (FFg % 128 == 0) and (Dg % 128 == 0)
    b2_full = jnp.tile(jnp.asarray(b2, jnp.float32), groups)          # (D,)

    if grouped:
        w1t = jnp.asarray(w1, cdt).T                                  # (D, FF)
        b1r = jnp.asarray(b1, jnp.float32).reshape(1, FF)
        w2p = jnp.asarray(w2, cdt).T                                  # (FFg, Dg)
        b2r = b2_full.reshape(1, D)
        ff_pad, d_pad = FF, D
    else:
        # Lane-dense padding of FF and the output D (input D / x untouched).
        ff_pad = _round_up(max(FF, 128), 128)
        d_pad = _round_up(max(D, 128), 128)
        w1t = jnp.zeros((D, ff_pad), cdt).at[:, :FF].set(jnp.asarray(w1, cdt).T)
        b1r = jnp.zeros((1, ff_pad), jnp.float32).at[0, :FF].set(
            jnp.asarray(b1, jnp.float32))
        w2bd = jnp.kron(jnp.eye(groups, dtype=jnp.float32),
                        jnp.asarray(w2, jnp.float32).T)               # (FF, D)
        w2p = jnp.zeros((ff_pad, d_pad), jnp.float32).at[:FF, :D].set(
            w2bd).astype(cdt)
        b2r = jnp.zeros((1, d_pad), jnp.float32).at[0, :D].set(b2_full)

    return dict(w1t=w1t, b1=b1r, w2=w2p, b2=b2r,
                groups=groups, grouped=grouped,
                d_model=D, ff=FF, ffg=FFg, dg=Dg,
                ff_pad=ff_pad, d_pad=d_pad, compute_dtype=cdt)


# --------------------------------------------------------------------------
# Forward wrapper
# --------------------------------------------------------------------------
def gffn_forward(x, params, *, out_dtype=None,
                 tm_resident=256, tm_streaming=512, vmem_budget_override=None):
    """x: (B, L, D) with D == HIDDEN_SIZE.  params: prepare_gffn_params(...)."""
    B, L, D = x.shape
    assert D == params["d_model"]
    out_dtype = np.dtype(out_dtype) if out_dtype is not None else np.dtype(x.dtype)
    cdt = params["compute_dtype"]
    ebytes = cdt.itemsize
    xbytes = np.dtype(x.dtype).itemsize
    obytes = out_dtype.itemsize
    G = params["groups"]
    ffg, dg = params["ffg"], params["dg"]

    N = B * L
    vmem_limit = _vmem_budget_bytes()
    budget = vmem_budget_override or vmem_limit     # override is for testing only
    slack = 2 << 20                                 # compiler-internal headroom

    if params["grouped"]:
        # ---------- shared-RHS grouped path ----------
        def fits(tm, m):
            w = (D * ffg * m + ffg * dg) * ebytes + (ffg * m + dg * m) * 4
            act = (2 * tm * D * xbytes + 2 * tm * dg * m * obytes
                   + tm * ffg * m * 4 + tm * dg * m * 4)
            return 2 * w + act + slack <= budget    # 2x: double-buffered blocks

        tm = _pick_tm(N, tm_resident)
        m = G
        if not fits(tm, m):
            # Weight-streaming regime: bigger row tile, smaller group chunk.
            tm = _pick_tm(N, tm_streaming)
            m = next((mm for mm in _divisors_desc(G) if fits(tm, mm)), 1)
        n_chunks = G // m

        n_pad = _round_up(N, tm)
        x2 = x.reshape(N, D)                        # no wrapper-side cast of x
        if n_pad != N:                              # ragged last row tile only
            x2 = jnp.pad(x2, ((0, n_pad - N), (0, 0)))
        row_core = _is_multi_core_chip() and (n_pad // tm) % 2 == 0
        call = _build_grouped_call(n_pad, D, ffg, dg, m, n_chunks, tm,
                                   cdt.name, out_dtype.name, vmem_limit, row_core)
        out = call(x2, params["w1t"], params["b1"], params["w2"], params["b2"])
        if n_pad != N:
            out = out[:N]
        return out.reshape(B, L, D)

    # ---------- block-diagonal (lane-padded) path ----------
    ff_pad, d_pad = params["ff_pad"], params["d_pad"]

    def fits(tm, tff, tiled):
        w = (D * tff + tff * d_pad) * ebytes + (tff + d_pad) * 4
        act = (2 * tm * D * xbytes + 2 * tm * d_pad * obytes
               + tm * tff * 4 + tm * d_pad * 4)
        if tiled:
            act += tm * d_pad * 4                   # f32 accumulator
        return 2 * w + act + slack <= budget

    tm = _pick_tm(N, tm_resident)
    if fits(tm, ff_pad, False):
        tff = ff_pad                                # whole weights resident
    else:
        tm = _pick_tm(N, tm_streaming)
        tff = _largest_ff_tile(ff_pad, lambda t: fits(tm, t, True))

    n_pad = _round_up(N, tm)
    x2 = x.reshape(N, D)
    if n_pad != N:
        x2 = jnp.pad(x2, ((0, n_pad - N), (0, 0)))
    row_core = _is_multi_core_chip() and (n_pad // tm) % 2 == 0
    call = _build_blockdiag_call(n_pad, D, ff_pad, d_pad, tff, tm,
                                 cdt.name, out_dtype.name, vmem_limit, row_core)
    out = call(x2, params["w1t"], params["b1"], params["w2"], params["b2"])
    if n_pad != N:
        out = out[:N]
    if d_pad != D:
        out = out[:, :D]
    return out.reshape(B, L, D)


# --------------------------------------------------------------------------
# Pure-JAX reference (mirrors the PyTorch forward, eval mode)
# --------------------------------------------------------------------------
def gffn_reference(x, w1, b1, w2, b2, groups):
    B, L, D = x.shape
    h = jnp.maximum(jnp.einsum("bld,fd->blf", x, w1, precision="highest") + b1, 0.0)
    hg = h.reshape(B, L, groups, -1)
    y = jnp.einsum("blgf,hf->blgh", hg, w2, precision="highest") + b2
    return y.reshape(B, L, D)


def _make_case(key, B, L, D, FF, G):
    ks = jax.random.split(key, 5)
    x = jax.random.normal(ks[0], (B, L, D), jnp.float32)
    w1 = jax.random.normal(ks[1], (FF, D), jnp.float32) * 0.05
    b1 = jax.random.normal(ks[2], (FF,), jnp.float32) * 0.05
    w2 = jax.random.normal(ks[3], (D // G, FF // G), jnp.float32) * 0.05
    b2 = jax.random.normal(ks[4], (D // G,), jnp.float32) * 0.05
    return x, w1, b1, w2, b2


if __name__ == "__main__":
    # --- Case 1: the shipped GFFN config (HIDDEN=32, FF=64, GROUP=4, eval). ---
    B, L, HIDDEN, FF, GROUP = 2, 8, 32, 64, 4
    x, w1, b1, w2, b2 = _make_case(jax.random.PRNGKey(0), B, L, HIDDEN, FF, GROUP)
    y_ref = gffn_reference(x, w1, b1, w2, b2, GROUP)

    p32 = prepare_gffn_params(w1, b1, w2, b2, GROUP, compute_dtype=jnp.float32)
    y = jax.block_until_ready(gffn_forward(x, p32))
    np.testing.assert_allclose(np.asarray(y), np.asarray(y_ref), rtol=1e-5, atol=1e-5)

    pbf16 = prepare_gffn_params(w1, b1, w2, b2, GROUP, compute_dtype=jnp.bfloat16)
    ybf = jax.block_until_ready(gffn_forward(x, pbf16))
    np.testing.assert_allclose(np.asarray(ybf), np.asarray(y_ref), rtol=2e-2, atol=2e-2)

    # --- Case 2: 128-aligned groups -> shared-RHS grouped path, ragged N. ---
    B2, L2, H2, FF2, G2 = 2, 65, 256, 1024, 2
    x2, w1b, b1b, w2b, b2b = _make_case(jax.random.PRNGKey(1), B2, L2, H2, FF2, G2)
    y_ref2 = gffn_reference(x2, w1b, b1b, w2b, b2b, G2)
    pg = prepare_gffn_params(w1b, b1b, w2b, b2b, G2, compute_dtype=jnp.float32)
    y2 = jax.block_until_ready(gffn_forward(x2, pg))
    np.testing.assert_allclose(np.asarray(y2), np.asarray(y_ref2), rtol=1e-3, atol=1e-3)

    # Same case with a tiny fake VMEM budget -> exercises the group-chunked
    # (weight-streaming) variant of the grouped kernel.
    y2s = jax.block_until_ready(gffn_forward(x2, pg, vmem_budget_override=4 << 20))
    np.testing.assert_allclose(np.asarray(y2s), np.asarray(y_ref2), rtol=1e-3, atol=1e-3)

    # --- Case 3: non-aligned groups + forced FF tiling -> block-diagonal
    #     accumulator kernel (pl.when init/finalize path). ---
    B3, L3, H3, FF3, G3 = 2, 8, 32, 512, 4
    x3, w1c, b1c, w2c, b2c = _make_case(jax.random.PRNGKey(2), B3, L3, H3, FF3, G3)
    y_ref3 = gffn_reference(x3, w1c, b1c, w2c, b2c, G3)
    pc = prepare_gffn_params(w1c, b1c, w2c, b2c, G3, compute_dtype=jnp.float32)
    y3 = jax.block_until_ready(gffn_forward(x3, pc, vmem_budget_override=1 << 20))
    np.testing.assert_allclose(np.asarray(y3), np.asarray(y_ref3), rtol=1e-4, atol=1e-4)

    print("KERNEL_OK")
</pallas_src>

<mosaic_0001>
module attributes {stable_mosaic.version = 11 : i64} {
  func.func @kernel(%arg0: i32, %arg1: i32, %arg2: memref<16x32xf32, #tpu.memory_space<vmem>>, %arg3: memref<32x128xf32, #tpu.memory_space<vmem>>, %arg4: memref<1x128xf32, #tpu.memory_space<vmem>>, %arg5: memref<128x128xf32, #tpu.memory_space<vmem>>, %arg6: memref<1x128xf32, #tpu.memory_space<vmem>>, %arg7: memref<16x128xf32, #tpu.memory_space<vmem>>) attributes {dimension_semantics = [#tpu.dimension_semantics<parallel>, #tpu.dimension_semantics<parallel>], iteration_bounds = array<i64: 1, 1>, scalar_prefetch = 0 : i64, scratch_operands = 0 : i64, tpu.core_type = #tpu.core_type<tc>, window_params = [{transform_indices = @transform_0, window_bounds = array<i64: 16, 32>}, {transform_indices = @transform_1, window_bounds = array<i64: 32, 128>}, {transform_indices = @transform_2, window_bounds = array<i64: 1, 128>}, {transform_indices = @transform_3, window_bounds = array<i64: 128, 128>}, {pipeline_mode = #tpu.pipeline_mode<synchronous>, transform_indices = @transform_4, window_bounds = array<i64: 1, 128>}, {transform_indices = @transform_5, window_bounds = array<i64: 16, 128>}]} {
    %c0 = arith.constant 0 : index
    %c0_0 = arith.constant 0 : index
    %0 = vector.load %arg2[%c0, %c0_0] : memref<16x32xf32, #tpu.memory_space<vmem>>, vector<16x32xf32>
    %c0_1 = arith.constant 0 : index
    %c0_2 = arith.constant 0 : index
    %1 = vector.load %arg3[%c0_1, %c0_2] : memref<32x128xf32, #tpu.memory_space<vmem>>, vector<32x128xf32>
    %cst = arith.constant dense<0.000000e+00> : vector<16x128xf32>
    %2 = tpu.matmul %0, %1, %cst {dimension_numbers = #tpu.dot_dimension_numbers<[1], [0], [0], [1], [0, 0, 1, 1], [], []>} : vector<16x32xf32>, vector<32x128xf32>, vector<16x128xf32> -> vector<16x128xf32>
    %c0_3 = arith.constant 0 : index
    %c0_4 = arith.constant 0 : index
    %3 = vector.load %arg4[%c0_3, %c0_4] : memref<1x128xf32, #tpu.memory_space<vmem>>, vector<1x128xf32>
    %4 = vector.broadcast %3 : vector<1x128xf32> to vector<16x128xf32>
    %5 = arith.addf %2, %4 : vector<16x128xf32>
    %cst_5 = arith.constant 0.000000e+00 : f32
    %6 = vector.broadcast %cst_5 : f32 to vector<16x128xf32>
    %7 = arith.maximumf %5, %6 : vector<16x128xf32>
    %c0_6 = arith.constant 0 : index
    %c0_7 = arith.constant 0 : index
    %8 = vector.load %arg5[%c0_6, %c0_7] : memref<128x128xf32, #tpu.memory_space<vmem>>, vector<128x128xf32>
    %cst_8 = arith.constant dense<0.000000e+00> : vector<16x128xf32>
    %9 = tpu.matmul %7, %8, %cst_8 {dimension_numbers = #tpu.dot_dimension_numbers<[1], [0], [0], [1], [0, 0, 1, 1], [], []>} : vector<16x128xf32>, vector<128x128xf32>, vector<16x128xf32> -> vector<16x128xf32>
    %c0_9 = arith.constant 0 : index
    %c0_10 = arith.constant 0 : index
    %10 = vector.load %arg6[%c0_9, %c0_10] : memref<1x128xf32, #tpu.memory_space<vmem>>, vector<1x128xf32>
    %11 = vector.broadcast %10 : vector<1x128xf32> to vector<16x128xf32>
    %12 = arith.addf %9, %11 : vector<16x128xf32>
    %c0_11 = arith.constant 0 : index
    %c0_12 = arith.constant 0 : index
    %13 = vector.load %arg7[%c0_11, %c0_12] : memref<16x128xf32, #tpu.memory_space<vmem>>, vector<16x128xf32>
    tpu.vector_store %arg7[%c0_11, %c0_12], %12 {strides = array<i32>} : memref<16x128xf32, #tpu.memory_space<vmem>>, vector<16x128xf32>,
    return
  }
  func.func @transform_0(%arg0: i32, %arg1: i32) -> (i32, i32) {
    %c0_i32 = arith.constant 0 : i32
    %c0_i32_0 = arith.constant 0 : i32
    return %arg0, %c0_i32 : i32, i32
  }
  func.func @transform_1(%arg0: i32, %arg1: i32) -> (i32, i32) {
    %c0_i32 = arith.constant 0 : i32
    %c0_i32_0 = arith.constant 0 : i32
    return %c0_i32, %arg1 : i32, i32
  }
  func.func @transform_2(%arg0: i32, %arg1: i32) -> (i32, i32) {
    %c0_i32 = arith.constant 0 : i32
    %c0_i32_0 = arith.constant 0 : i32
    return %c0_i32, %arg1 : i32, i32
  }
  func.func @transform_3(%arg0: i32, %arg1: i32) -> (i32, i32) {
    %c0_i32 = arith.constant 0 : i32
    %c0_i32_0 = arith.constant 0 : i32
    return %arg1, %c0_i32 : i32, i32
  }
  func.func @transform_4(%arg0: i32, %arg1: i32) -> (i32, i32) {
    %c0_i32 = arith.constant 0 : i32
    %c0_i32_0 = arith.constant 0 : i32
    %c0_i32_1 = arith.constant 0 : i32
    return %c0_i32, %c0_i32_0 : i32, i32
  }
  func.func @transform_5(%arg0: i32, %arg1: i32) -> (i32, i32) {
    %c0_i32 = arith.constant 0 : i32
    %c0_i32_0 = arith.constant 0 : i32
    return %arg0, %c0_i32 : i32, i32
  }
}

</mosaic_0001>

<llo_original>
// kernel: tpu_custom_call.1
$region0: #{tpu_custom_call.1}
  #allocation0 [shape = 'u32[]', space=smem, size = 0x4, offset = 0x4, fixed_abs, tag = 'smem constant byte address 0x4 - core index']
  #allocation1 [shape = 'u32[144,128]{1,0:T(1,128)}', space=vmem, size = 0x12000, scoped, tag = 'internal scratch']
  %s0 = inlined_call_operand.hbm [shape: f32[16,32], index: 0, kind: input, shape index: {}]
  %s1 = inlined_call_operand.hbm [shape: f32[32,128], index: 1, kind: input, shape index: {}]
  %s2 = inlined_call_operand.hbm [shape: f32[1,128], index: 2, kind: input, shape index: {}]
  %s3 = inlined_call_operand.hbm [shape: f32[128,128], index: 3, kind: input, shape index: {}]
  %s4 = inlined_call_operand.hbm [shape: f32[1,128], index: 4, kind: input, shape index: {}]
  %s5 = inlined_call_operand.hbm [shape: f32[16,128], index: 5, kind: output, shape index: {}]
  %s6 = sld [smem:[#allocation0]]
  $region50: #{tpu_custom_call.1} parent=0
    _
  %s8 = ssub.s32 1, %s6
  %s9 = scalar_select 0, %s8, %s6
  $region1: #{tpu_custom_call.1} parent=0
    #allocation2 [shape = 'u8[8192]{0}', space=vmem, size = 0x2000, scoped, tag = 'input window, operand 0, single buffered']
    #allocation3 [shape = 's32[1]{0}', space=sflag, size = 0x4, scoped, tag = 'scoped memory for tpu_custom_call.1']
    #allocation4 [shape = 's32[1]{0}', space=sflag, size = 0x4, scoped, tag = 'scoped memory for tpu_custom_call.1']
    #allocation5 [shape = 'u8[16384]{0}', space=vmem, size = 0x4000, scoped, tag = 'input window, operand 1, single buffered']
    #allocation6 [shape = 's32[1]{0}', space=sflag, size = 0x4, scoped, tag = 'scoped memory for tpu_custom_call.1']
    #allocation7 [shape = 'u8[512]{0}', space=vmem, size = 0x400, scoped, tag = 'input window, operand 2, single buffered']
    #allocation8 [shape = 'u8[65536]{0}', space=vmem, size = 0x10000, scoped, tag = 'input window, operand 3, single buffered']
    #allocation9 [shape = 's32[1]{0}', space=sflag, size = 0x4, scoped, tag = 'scoped memory for tpu_custom_call.1']
    #allocation10 [shape = 'u8[512]{0}', space=vmem, size = 0x400, scoped, tag = 'input window, operand 4, single buffered']
    #allocation11 [shape = 'u8[8192]{0}', space=vmem, size = 0x2000, scoped, tag = 'output window, operand 0, single buffered']
    %10 = vsyncpa [#allocation3], 0
    %11 = vsyncpa [#allocation6], 0
    %12 = vsyncpa [#allocation9], 0
    %13 = vsyncpa [#allocation4], 0
    // Predicated region
    $region2: #{tpu_custom_call.1} parent=1 // pred_check
      _
    $region3: #{tpu_custom_call.1} parent=1 // pred_check_branch
      %15 = sbr.rel (0) target = $region5
    $region4: #{tpu_custom_call.1} parent=1 // pred_region
      %s17 = ssub.s32 256, 256
      %18 = vsyncadd [#allocation3], %s17
      %s19 = sshll.u32 [#allocation2], 4
      %s20 = int_to_ptr.vmem [resolvable:$true] %s19
      %25 = dma.hbm_to_vmem [thread:$0]  %s0, 256, %s20, [#allocation3], 128, 128, 8
    $region5: #{tpu_custom_call.1} parent=1 // pred_fallthru
      _
    // Predicated region
    $region6: #{tpu_custom_call.1} parent=1 // pred_check
      _
    $region7: #{tpu_custom_call.1} parent=1 // pred_check_branch
      %27 = sbr.rel (0) target = $region9
    $region8: #{tpu_custom_call.1} parent=1 // pred_region
      %s29 = ssub.s32 512, 512
      %30 = vsyncadd [#allocation6], %s29
      %s31 = sshll.u32 [#allocation5], 4
      %s32 = int_to_ptr.vmem [resolvable:$true] %s31
      %37 = dma.hbm_to_vmem [thread:$0]  %s1, 512, %s32, [#allocation6], 128, 128, 8
    $region9: #{tpu_custom_call.1} parent=1 // pred_fallthru
      _
    // Predicated region
    $region10: #{tpu_custom_call.1} parent=1 // pred_check
      _
    $region11: #{tpu_custom_call.1} parent=1 // pred_check_branch
      %39 = sbr.rel (0) target = $region13
    $region12: #{tpu_custom_call.1} parent=1 // pred_region
      %s41 = ssub.s32 16, 16
      %42 = vsyncadd [#allocation6], %s41
      %s44 = sshll.u32 [#allocation7], 4
      %s45 = int_to_ptr.vmem [resolvable:$true] %s44
      %47 = dma.hbm_to_vmem [thread:$0]  %s2, 16, %s45, [#allocation6]
    $region13: #{tpu_custom_call.1} parent=1 // pred_fallthru
      _
    // Predicated region
    $region14: #{tpu_custom_call.1} parent=1 // pred_check
      _
    $region15: #{tpu_custom_call.1} parent=1 // pred_check_branch
      %49 = sbr.rel (0) target = $region17
    $region16: #{tpu_custom_call.1} parent=1 // pred_region
      %s51 = ssub.s32 2048, 2048
      %52 = vsyncadd [#allocation9], %s51
      %s53 = sshll.u32 [#allocation8], 4
      %s54 = int_to_ptr.vmem [resolvable:$true] %s53
      %59 = dma.hbm_to_vmem [thread:$0]  %s3, 2048, %s54, [#allocation9], 128, 128, 8
    $region17: #{tpu_custom_call.1} parent=1 // pred_fallthru
      _
    // Predicated region
    $region18: #{tpu_custom_call.1} parent=1 // pred_check
      _
    $region19: #{tpu_custom_call.1} parent=1 // pred_check_branch
      %61 = sbr.rel (0) target = $region21
    $region20: #{tpu_custom_call.1} parent=1 // pred_region
      %s63 = ssub.s32 16, 16
      %64 = vsyncadd [#allocation9], %s63
      %s66 = sshll.u32 [#allocation10], 4
      %s67 = int_to_ptr.vmem [resolvable:$true] %s66
      %69 = dma.hbm_to_vmem [thread:$0]  %s4, 16, %s67, [#allocation9]
    $region21: #{tpu_custom_call.1} parent=1 // pred_fallthru
      _
    // Predicated region
    $region22: #{tpu_custom_call.1} parent=1 // pred_check
      _
    $region23: #{tpu_custom_call.1} parent=1 // pred_check_branch
      %71 = sbr.rel (0) target = $region25
    $region24: #{tpu_custom_call.1} parent=1 // pred_region
      %72 = dma.done [#allocation3], 256
    $region25: #{tpu_custom_call.1} parent=1 // pred_fallthru
      _
    // Predicated region
    $region26: #{tpu_custom_call.1} parent=1 // pred_check
      _
    $region27: #{tpu_custom_call.1} parent=1 // pred_check_branch
      %74 = sbr.rel (0) target = $region29
    $region28: #{tpu_custom_call.1} parent=1 // pred_region
      %75 = dma.done [#allocation6], 512
    $region29: #{tpu_custom_call.1} parent=1 // pred_fallthru
      _
    // Predicated region
    $region30: #{tpu_custom_call.1} parent=1 // pred_check
      _
    $region31: #{tpu_custom_call.1} parent=1 // pred_check_branch
      %77 = sbr.rel (0) target = $region33
    $region32: #{tpu_custom_call.1} parent=1 // pred_region
      %78 = dma.done [#allocation6], 16
    $region33: #{tpu_custom_call.1} parent=1 // pred_fallthru
      _
    // Predicated region
    $region34: #{tpu_custom_call.1} parent=1 // pred_check
      _
    $region35: #{tpu_custom_call.1} parent=1 // pred_check_branch
      %80 = sbr.rel (0) target = $region37
    $region36: #{tpu_custom_call.1} parent=1 // pred_region
      %81 = dma.done [#allocation9], 2048
    $region37: #{tpu_custom_call.1} parent=1 // pred_fallthru
      _
    // Predicated region
    $region38: #{tpu_custom_call.1} parent=1 // pred_check
      _
    $region39: #{tpu_custom_call.1} parent=1 // pred_check_branch
      %83 = sbr.rel (0) target = $region41
    $region40: #{tpu_custom_call.1} parent=1 // pred_region
      %84 = dma.done [#allocation9], 16
    $region41: #{tpu_custom_call.1} parent=1 // pred_fallthru
      _
    %v85 = vld [vmem:[#allocation2] sm:$0xff]
    %v86 = vld [vmem:[#allocation2 + $0x8] sm:$0xff]
    %v87 = vld [vmem:[#allocation5] sm:$0xff]
    %v88 = vld [vmem:[#allocation5 + $0x8] sm:$0xff]
    %v89 = vld [vmem:[#allocation5 + $0x10] sm:$0xff]
    %v90 = vld [vmem:[#allocation5 + $0x18] sm:$0xff]
    %v91 = vld [vmem:[#allocation7] sm:$0x1]
    %v93 = vlaneseq
    %v94 = vshrl.u32 %v93, 7
    %v95 = vsub.s32 0, %v94
    %v96 = vrot.slane %v91, %v95
    %vm98 = vcmask 261120
    %v100 = vsel %vm98, %v85, 0
    %v103 = vsel %vm98, %v86, 0
    %105 = vmatprep.subr.mxu0 0.0
    %106 = vmatpush1.msra.mxu0 %v87
    %107 = vmatprep.subr.mxu0 0.0
    %108 = vmatpush1.msra.mxu0 %v88
    %109 = vmatprep.subr.mxu0 0.0
    %110 = vmatpush1.msra.mxu0 %v89
    %111 = vmatprep.subr.mxu0 0.0
    %112 = vmatpush1.msra.mxu0 %v90
    %113 = vmatprep.subr.mxu0 0.0
    %114 = vmatpush1.msra.mxu0 0.0
    %115 = vmatprep.subr.mxu0 0.0
    %116 = vmatpush1.msra.mxu0 0.0
    %117 = vmatprep.subr.mxu0 0.0
    %118 = vmatpush1.msra.mxu0 0.0
    %119 = vmatprep.subr.mxu0 0.0
    %120 = vmatpush1.msra.mxu0 0.0
    %121 = vmatprep.subr.mxu0 0.0
    %122 = vmatpush1.msra.mxu0 0.0
    %123 = vmatprep.subr.mxu0 0.0
    %124 = vmatpush1.msra.mxu0 0.0
    %125 = vmatprep.subr.mxu0 0.0
    %126 = vmatpush1.msra.mxu0 0.0
    %127 = vmatprep.subr.mxu0 0.0
    %128 = vmatpush1.msra.mxu0 0.0
    %129 = vmatprep.subr.mxu0 0.0
    %130 = vmatpush1.msra.mxu0 0.0
    %131 = vmatprep.subr.mxu0 0.0
    %132 = vmatpush1.msra.mxu0 0.0
    %133 = vmatprep.subr.mxu0 0.0
    %134 = vmatpush1.msra.mxu0 0.0
    %135 = vmatprep.subr.mxu0 0.0
    %136 = vmatpush1.msra.mxu0 0.0
    %137 = vmatprep.subr.mxu0 0.0
    %138 = vmatpush1.msra.mxu0 0.0
    %139 = vmatprep.subr.mxu0 0.0
    %140 = vmatpush1.msra.mxu0 0.0
    %141 = vmatprep.subr.mxu0 0.0
    %142 = vmatpush1.msra.mxu0 0.0
    %143 = vmatprep.subr.mxu0 0.0
    %144 = vmatpush1.msra.mxu0 0.0
    %145 = vmatprep.subr.mxu0 0.0
    %146 = vmatpush1.msra.mxu0 0.0
    %147 = vmatprep.subr.mxu0 0.0
    %148 = vmatpush1.msra.mxu0 0.0
    %149 = vmatprep.subr.mxu0 0.0
    %150 = vmatpush1.msra.mxu0 0.0
    %151 = vmatprep.subr.mxu0 0.0
    %152 = vmatpush1.msra.mxu0 0.0
    %153 = vmatprep.subr.mxu0 0.0
    %154 = vmatpush1.msra.mxu0 0.0
    %155 = vmatprep.subr.mxu0 0.0
    %156 = vmatpush1.msra.mxu0 0.0
    %157 = vmatprep.subr.mxu0 0.0
    %158 = vmatpush1.msra.mxu0 0.0
    %159 = vmatprep.subr.mxu0 0.0
    %160 = vmatpush1.msra.mxu0 0.0
    %161 = vmatprep.subr.mxu0 0.0
    %162 = vmatpush1.msra.mxu0 0.0
    %163 = vmatprep.subr.mxu0 0.0
    %164 = vmatpush1.msra.mxu0 0.0
    %165 = vmatprep.subr.mxu0 0.0
    %166 = vmatpush1.msra.mxu0 0.0
    %167 = vmatprep.subr.mxu0 0.0
    %168 = vmatpush1.msra.mxu0 0.0
    %169 = vmatprep.mubr.f32.mxu0 0.0
    %170 = vmatmul.mubr.f32.gmra.mrb[0].mxu0 %v100
    %v171 = vpop.f32.mrb[0].mxu0
    %v172 = vadd.f32 %v96, %v171
    %v173 = vpop.f32.mrb[0].mxu0
    %174 = vmatprep.mubr.f32.mxu0 0.0
    %175 = vmatmul.mubr.f32.gmra.mrb[0].mxu0 %v103
    %v176 = vpop.f32.mrb[0].mxu0
    %v177 = vadd.f32 %v96, %v176
    %v178 = vpop.f32.mrb[0].mxu0
    %179 = vdwg.mxu0
    %v180 = vmax.f32 %v172, 0.0
    %v181 = vmax.f32 %v177, 0.0
    %v182 = vld [vmem:[#allocation8] sm:$0xff]
    %v183 = vld [vmem:[#allocation8 + $0x8] sm:$0xff]
    %v184 = vld [vmem:[#allocation8 + $0x10] sm:$0xff]
    %v185 = vld [vmem:[#allocation8 + $0x18] sm:$0xff]
    %v186 = vld [vmem:[#allocation8 + $0x20] sm:$0xff]
    %v187 = vld [vmem:[#allocation8 + $0x28] sm:$0xff]
    %v188 = vld [vmem:[#allocation8 + $0x30] sm:$0xff]
    %v189 = vld [vmem:[#allocation8 + $0x38] sm:$0xff]
    %v190 = vld [vmem:[#allocation8 + $0x40] sm:$0xff]
    %v191 = vld [vmem:[#allocation8 + $0x48] sm:$0xff]
    %v192 = vld [vmem:[#allocation8 + $0x50] sm:$0xff]
    %v193 = vld [vmem:[#allocation8 + $0x58] sm:$0xff]
    %v194 = vld [vmem:[#allocation8 + $0x60] sm:$0xff]
    %v195 = vld [vmem:[#allocation8 + $0x68] sm:$0xff]
    %v196 = vld [vmem:[#allocation8 + $0x70] sm:$0xff]
    %v197 = vld [vmem:[#allocation8 + $0x78] sm:$0xff]
    %v198 = vld [vmem:[#allocation10] sm:$0x1]
    %v200 = vlaneseq
    %v201 = vshrl.u32 %v200, 7
    %v202 = vsub.s32 0, %v201
    %v203 = vrot.slane %v198, %v202
    %205 = vmatprep.subr.mxu0 0.0
    %206 = vmatpush1.msra.mxu0 %v182
    %207 = vmatprep.subr.mxu0 0.0
    %208 = vmatpush1.msra.mxu0 %v183
    %209 = vmatprep.subr.mxu0 0.0
    %210 = vmatpush1.msra.mxu0 %v184
    %211 = vmatprep.subr.mxu0 0.0
    %212 = vmatpush1.msra.mxu0 %v185
    %213 = vmatprep.subr.mxu0 0.0
    %214 = vmatpush1.msra.mxu0 %v186
    %215 = vmatprep.subr.mxu0 0.0
    %216 = vmatpush1.msra.mxu0 %v187
    %217 = vmatprep.subr.mxu0 0.0
    %218 = vmatpush1.msra.mxu0 %v188
    %219 = vmatprep.subr.mxu0 0.0
    %220 = vmatpush1.msra.mxu0 %v189
    %221 = vmatprep.subr.mxu0 0.0
    %222 = vmatpush1.msra.mxu0 %v190
    %223 = vmatprep.subr.mxu0 0.0
    %224 = vmatpush1.msra.mxu0 %v191
    %225 = vmatprep.subr.mxu0 0.0
    %226 = vmatpush1.msra.mxu0 %v192
    %227 = vmatprep.subr.mxu0 0.0
    %228 = vmatpush1.msra.mxu0 %v193
    %229 = vmatprep.subr.mxu0 0.0
    %230 = vmatpush1.msra.mxu0 %v194
    %231 = vmatprep.subr.mxu0 0.0
    %232 = vmatpush1.msra.mxu0 %v195
    %233 = vmatprep.subr.mxu0 0.0
    %234 = vmatpush1.msra.mxu0 %v196
    %235 = vmatprep.subr.mxu0 0.0
    %236 = vmatpush1.msra.mxu0 %v197
    %237 = vmatprep.subr.mxu0 0.0
    %238 = vmatpush1.msra.mxu0 0.0
    %239 = vmatprep.subr.mxu0 0.0
    %240 = vmatpush1.msra.mxu0 0.0
    %241 = vmatprep.subr.mxu0 0.0
    %242 = vmatpush1.msra.mxu0 0.0
    %243 = vmatprep.subr.mxu0 0.0
    %244 = vmatpush1.msra.mxu0 0.0
    %245 = vmatprep.subr.mxu0 0.0
    %246 = vmatpush1.msra.mxu0 0.0
    %247 = vmatprep.subr.mxu0 0.0
    %248 = vmatpush1.msra.mxu0 0.0
    %249 = vmatprep.subr.mxu0 0.0
    %250 = vmatpush1.msra.mxu0 0.0
    %251 = vmatprep.subr.mxu0 0.0
    %252 = vmatpush1.msra.mxu0 0.0
    %253 = vmatprep.subr.mxu0 0.0
    %254 = vmatpush1.msra.mxu0 0.0
    %255 = vmatprep.subr.mxu0 0.0
    %256 = vmatpush1.msra.mxu0 0.0
    %257 = vmatprep.subr.mxu0 0.0
    %258 = vmatpush1.msra.mxu0 0.0
    %259 = vmatprep.subr.mxu0 0.0
    %260 = vmatpush1.msra.mxu0 0.0
    %261 = vmatprep.subr.mxu0 0.0
    %262 = vmatpush1.msra.mxu0 0.0
    %263 = vmatprep.subr.mxu0 0.0
    %264 = vmatpush1.msra.mxu0 0.0
    %265 = vmatprep.subr.mxu0 0.0
    %266 = vmatpush1.msra.mxu0 0.0
    %267 = vmatprep.subr.mxu0 0.0
    %268 = vmatpush1.msra.mxu0 0.0
    %269 = vmatprep.mubr.f32.mxu0 0.0
    %270 = vmatmul.mubr.f32.gmra.mrb[0].mxu0 %v180
    %v271 = vpop.f32.mrb[0].mxu0
    %v272 = vadd.f32 %v203, %v271
    %v273 = vpop.f32.mrb[0].mxu0
    %274 = vmatprep.mubr.f32.mxu0 0.0
    %275 = vmatmul.mubr.f32.gmra.mrb[0].mxu0 %v181
    %v276 = vpop.f32.mrb[0].mxu0
    %v277 = vadd.f32 %v203, %v276
    %v278 = vpop.f32.mrb[0].mxu0
    %279 = vdwg.mxu0
    %280 = vst [vmem:[#allocation11] sm:$0xff] %v272
    %281 = vst [vmem:[#allocation11 + $0x8] sm:$0xff] %v277
    // Predicated region
    $region42: #{tpu_custom_call.1} parent=1 // pred_check
      _
    $region43: #{tpu_custom_call.1} parent=1 // pred_check_branch
      %283 = sbr.rel (0) target = $region45
    $region44: #{tpu_custom_call.1} parent=1 // pred_region
      %s285 = ssub.s32 256, 256
      %286 = vsyncadd [#allocation4], %s285
      %s287 = sshll.u32 [#allocation11], 4
      %s288 = int_to_ptr.vmem [resolvable:$true] %s287
      %293 = dma.vmem_to_hbm [thread:$0]  %s288, 256, %s5, [#allocation4], 128, 128, 8
    $region45: #{tpu_custom_call.1} parent=1 // pred_fallthru
      _
    // Predicated region
    $region46: #{tpu_custom_call.1} parent=1 // pred_check
      _
    $region47: #{tpu_custom_call.1} parent=1 // pred_check_branch
      %295 = sbr.rel (0) target = $region49
    $region48: #{tpu_custom_call.1} parent=1 // pred_region
      %296 = dma.done [#allocation4], 256
    $region49: #{tpu_custom_call.1} parent=1 // pred_fallthru
      _
    %297 = vsyncpa [#allocation3], 1
    %298 = vsyncpa [#allocation6], 1
    %299 = vsyncpa [#allocation9], 1
    %300 = vsyncpa [#allocation4], 1

</llo_original>
